<compile_context>
chip_gen: v7x
topology: tpu7x:2x2x1
jax: 0.10.0
libtpu: 0.0.40
codegen_flags: <defaults>
</compile_context>

<pallas_src>
import jax
import jax.numpy as jnp
from jax.experimental import pallas as pl
from jax.experimental.pallas import tpu as pltpu

LANE = 128


def _round_up(n, m):
    return ((n + m - 1) // m) * m


def critic_kernel(state_ref, apad_ref, w1_ref, aux1_ref, w2_ref, aux2_ref,
                  w3_ref, out_ref):
    """fc1 -> BatchNorm1d (training-mode batch stats, folded affine) -> ReLU
       -> merged "concat+fc2" -> ReLU -> fc3 (lane-dense padded output)."""
    s = state_ref[...]                                   # (B, state_size)

    # ---- fc1 ----
    h1 = jnp.dot(s, w1_ref[...], preferred_element_type=jnp.float32)
    h1 = h1 + aux1_ref[0:1, :]                           # + b1

    # ---- BatchNorm1d (training mode, biased variance, eps=1e-5),
    #      affine folded into a single scale/shift ----
    mean = jnp.mean(h1, axis=0, keepdims=True)
    var = jnp.mean((h1 - mean) * (h1 - mean), axis=0, keepdims=True)
    scale = aux1_ref[1:2, :] * jax.lax.rsqrt(var + 1e-5)  # gamma * rsqrt(var+eps)
    shift = aux1_ref[2:3, :] - mean * scale               # beta - mean*scale
    h1 = jnp.maximum(h1 * scale + shift, 0.0)             # BN + ReLU

    # ---- concat(h1, action): padded lanes of h1 are exactly 0, the action
    #      slab is pre-padded into those lanes, so an add == the concat. ----
    x2 = h1 + apad_ref[...]

    # ---- fc2 (single merged weight) + ReLU ----
    h2 = jnp.dot(x2, w2_ref[...], preferred_element_type=jnp.float32)
    h2 = jnp.maximum(h2 + aux2_ref[0:1, :], 0.0)

    # ---- fc3 -> lane-dense padded Q output ----
    out = jnp.dot(h2, w3_ref[...], preferred_element_type=jnp.float32)
    out_ref[...] = (out + aux2_ref[1:2, 0:out_ref.shape[1]]).astype(out_ref.dtype)


def critic_forward(state, action, params):
    (w1, b1, gamma, beta, w2, b2, w3, b3) = params
    B, state_size = state.shape
    action_size = action.shape[1]
    fc1_units = w1.shape[0]          # torch layout (out, in)
    fc2_units = w2.shape[0]
    reward_size = w3.shape[0]

    fc1_pad = _round_up(fc1_units, LANE)     # 400 -> 512
    fc2_pad = _round_up(fc2_units, LANE)     # 300 -> 384
    out_pad = _round_up(reward_size, LANE)   # 1   -> 128
    assert out_pad <= fc2_pad, "b3 is packed into the (8, fc2_pad) aux array"

    f32 = jnp.float32

    # fc1 weight (in, out_pad); padded output columns are zero.
    w1_t = jnp.zeros((state_size, fc1_pad), f32).at[:, :fc1_units].set(w1.T)

    # Packed layer-1 params: row0=b1, row1=gamma, row2=beta. Padded features
    # get b1=0, gamma=0, beta=0 so they are exactly 0 through BN+ReLU.
    aux1 = jnp.zeros((8, fc1_pad), f32)
    aux1 = aux1.at[0, :fc1_units].set(b1)
    aux1 = aux1.at[1, :fc1_units].set(gamma)
    aux1 = aux1.at[2, :fc1_units].set(beta)

    # Merged fc2 weight (fc1_pad, fc2_pad): rows [0, fc1) = state-path weights,
    # rows [fc1, fc1+action) = action-path weights, remaining rows/cols zero.
    w2_t = w2.T                                          # (fc1+action, fc2)
    w2m = jnp.zeros((fc1_pad, fc2_pad), f32)
    w2m = w2m.at[:fc1_units, :fc2_units].set(w2_t[:fc1_units])
    w2m = w2m.at[fc1_units:fc1_units + action_size, :fc2_units].set(
        w2_t[fc1_units:])

    # Action pre-padded into the merged layout's lanes [fc1, fc1+action).
    a_pad = jnp.zeros((B, fc1_pad), f32)
    a_pad = a_pad.at[:, fc1_units:fc1_units + action_size].set(action)

    # fc3 weight (fc2_pad, out_pad); padded rows/cols zero.
    w3_t = jnp.zeros((fc2_pad, out_pad), f32).at[:fc2_units, :reward_size].set(w3.T)

    # Packed layer-2/3 biases: row0=b2, row1=b3 (in the first out_pad lanes).
    aux2 = jnp.zeros((8, fc2_pad), f32)
    aux2 = aux2.at[0, :fc2_units].set(b2)
    aux2 = aux2.at[1, :reward_size].set(b3)

    inputs = (state.astype(f32), a_pad, w1_t, aux1, w2m, aux2, w3_t)

    def full_spec(x):
        # whole-array block, single kernel invocation (everything fits VMEM);
        # block == full array satisfies the (8,128) rule at any B.
        return pl.BlockSpec(x.shape, lambda: (0,) * x.ndim)

    out = pl.pallas_call(
        critic_kernel,
        out_shape=jax.ShapeDtypeStruct((B, out_pad), jnp.float32),
        in_specs=[full_spec(x) for x in inputs],
        out_specs=pl.BlockSpec((B, out_pad), lambda: (0, 0)),
        compiler_params=pltpu.CompilerParams(vmem_limit_bytes=16 << 20),
    )(*inputs)

    # Lane-dense kernel output; slice the real Q-value columns outside.
    return out[:, :reward_size]


def init_params(key, state_size, action_size, fc1_units=400, fc2_units=300,
                reward_size=1):
    """Deterministic init mirroring the PyTorch module's reset_parameters:
       - fc1/fc2 weights ~ U(-1/sqrt(out_features), +1/sqrt(out_features))
       - fc3 weight ~ U(-3e-3, 3e-3)
       - biases keep PyTorch Linear default: U(-1/sqrt(in_features), +...)
       - BatchNorm: gamma = 1, beta = 0
    """
    ks = jax.random.split(key, 6)
    merged = fc1_units + action_size

    lim1 = 1.0 / jnp.sqrt(jnp.float32(fc1_units))
    lim2 = 1.0 / jnp.sqrt(jnp.float32(fc2_units))

    w1 = jax.random.uniform(ks[0], (fc1_units, state_size), jnp.float32, -lim1, lim1)
    b1 = jax.random.uniform(ks[1], (fc1_units,), jnp.float32,
                            -1.0 / jnp.sqrt(jnp.float32(state_size)),
                            1.0 / jnp.sqrt(jnp.float32(state_size)))
    gamma = jnp.ones((fc1_units,), jnp.float32)
    beta = jnp.zeros((fc1_units,), jnp.float32)

    w2 = jax.random.uniform(ks[2], (fc2_units, merged), jnp.float32, -lim2, lim2)
    b2 = jax.random.uniform(ks[3], (fc2_units,), jnp.float32,
                            -1.0 / jnp.sqrt(jnp.float32(merged)),
                            1.0 / jnp.sqrt(jnp.float32(merged)))

    w3 = jax.random.uniform(ks[4], (reward_size, fc2_units), jnp.float32, -3e-3, 3e-3)
    b3 = jax.random.uniform(ks[5], (reward_size,), jnp.float32,
                            -1.0 / jnp.sqrt(jnp.float32(fc2_units)),
                            1.0 / jnp.sqrt(jnp.float32(fc2_units)))

    return (w1, b1, gamma, beta, w2, b2, w3, b3)


def reference_forward(state, action, params):
    """Pure-JAX reference (matches the PyTorch forward in training mode)."""
    (w1, b1, gamma, beta, w2, b2, w3, b3) = params
    h = state @ w1.T + b1
    mean = jnp.mean(h, axis=0, keepdims=True)
    var = jnp.mean((h - mean) ** 2, axis=0, keepdims=True)
    h = (h - mean) * jax.lax.rsqrt(var + 1e-5) * gamma + beta
    h = jnp.maximum(h, 0.0)
    x = jnp.concatenate([h, action], axis=1)
    x = jnp.maximum(x @ w2.T + b2, 0.0)
    return x @ w3.T + b3


if __name__ == "__main__":
    # Small, forward-consistent shapes.
    batch, state_size, action_size = 8, 32, 4
    fc1_units, fc2_units, reward_size = 400, 300, 1

    key = jax.random.PRNGKey(0)
    k_s, k_a, k_p = jax.random.split(key, 3)

    state = jax.random.normal(k_s, (batch, state_size), jnp.float32)
    # continuous actions in [-1, 1]
    action = jnp.tanh(jax.random.normal(k_a, (batch, action_size), jnp.float32))

    params = init_params(k_p, state_size, action_size, fc1_units, fc2_units,
                         reward_size)

    out = critic_forward(state, action, params)
    out = jax.block_until_ready(out)

    ref = reference_forward(state, action, params)
    assert out.shape == (batch, reward_size)
    assert jnp.allclose(out, ref, atol=1e-4, rtol=1e-4), "mismatch vs reference"

    print("KERNEL_OK")
</pallas_src>

<mosaic_0001>
module attributes {stable_mosaic.version = 11 : i64} {
  func.func @critic_kernel(%arg0: memref<8x32xf32, #tpu.memory_space<vmem>>, %arg1: memref<8x512xf32, #tpu.memory_space<vmem>>, %arg2: memref<32x512xf32, #tpu.memory_space<vmem>>, %arg3: memref<8x512xf32, #tpu.memory_space<vmem>>, %arg4: memref<512x384xf32, #tpu.memory_space<vmem>>, %arg5: memref<8x384xf32, #tpu.memory_space<vmem>>, %arg6: memref<384x128xf32, #tpu.memory_space<vmem>>, %arg7: memref<8x128xf32, #tpu.memory_space<vmem>>) attributes {dimension_semantics = [], scalar_prefetch = 0 : i64, scratch_operands = 0 : i64, tpu.core_type = #tpu.core_type<tc>} {
    %c0 = arith.constant 0 : index
    %c0_0 = arith.constant 0 : index
    %0 = vector.load %arg0[%c0, %c0_0] : memref<8x32xf32, #tpu.memory_space<vmem>>, vector<8x32xf32>
    %c0_1 = arith.constant 0 : index
    %c0_2 = arith.constant 0 : index
    %1 = vector.load %arg2[%c0_1, %c0_2] : memref<32x512xf32, #tpu.memory_space<vmem>>, vector<32x512xf32>
    %cst = arith.constant dense<0.000000e+00> : vector<8x512xf32>
    %2 = tpu.matmul %0, %1, %cst {dimension_numbers = #tpu.dot_dimension_numbers<[1], [0], [0], [1], [0, 0, 1, 1], [], []>} : vector<8x32xf32>, vector<32x512xf32>, vector<8x512xf32> -> vector<8x512xf32>
    %c0_3 = arith.constant 0 : index
    %c0_4 = arith.constant 0 : index
    %3 = vector.load %arg3[%c0_3, %c0_4] : memref<8x512xf32, #tpu.memory_space<vmem>>, vector<1x512xf32>
    %4 = vector.broadcast %3 : vector<1x512xf32> to vector<8x512xf32>
    %5 = arith.addf %2, %4 : vector<8x512xf32>
    %cst_5 = arith.constant dense<0.000000e+00> : vector<512xf32>
    %6 = vector.multi_reduction <add>, %5, %cst_5 [0] : vector<8x512xf32> to vector<512xf32>
    %7 = vector.shape_cast %6 : vector<512xf32> to vector<1x512xf32>
    %cst_6 = arith.constant 8.000000e+00 : f32
    %8 = vector.broadcast %cst_6 : f32 to vector<1x512xf32>
    %9 = arith.divf %7, %8 : vector<1x512xf32>
    %10 = vector.broadcast %9 : vector<1x512xf32> to vector<8x512xf32>
    %11 = arith.subf %5, %10 : vector<8x512xf32>
    %12 = vector.broadcast %9 : vector<1x512xf32> to vector<8x512xf32>
    %13 = arith.subf %5, %12 : vector<8x512xf32>
    %14 = arith.mulf %11, %13 : vector<8x512xf32>
    %cst_7 = arith.constant dense<0.000000e+00> : vector<512xf32>
    %15 = vector.multi_reduction <add>, %14, %cst_7 [0] : vector<8x512xf32> to vector<512xf32>
    %16 = vector.shape_cast %15 : vector<512xf32> to vector<1x512xf32>
    %cst_8 = arith.constant 8.000000e+00 : f32
    %17 = vector.broadcast %cst_8 : f32 to vector<1x512xf32>
    %18 = arith.divf %16, %17 : vector<1x512xf32>
    %c1 = arith.constant 1 : index
    %c0_9 = arith.constant 0 : index
    %19 = vector.load %arg3[%c1, %c0_9] : memref<8x512xf32, #tpu.memory_space<vmem>>, vector<1x512xf32>
    %cst_10 = arith.constant 9.99999974E-6 : f32
    %20 = vector.broadcast %cst_10 : f32 to vector<1x512xf32>
    %21 = arith.addf %18, %20 : vector<1x512xf32>
    %22 = math.rsqrt %21 : vector<1x512xf32>
    %23 = arith.mulf %19, %22 : vector<1x512xf32>
    %c2 = arith.constant 2 : index
    %c0_11 = arith.constant 0 : index
    %24 = vector.load %arg3[%c2, %c0_11] : memref<8x512xf32, #tpu.memory_space<vmem>>, vector<1x512xf32>
    %25 = arith.mulf %9, %23 : vector<1x512xf32>
    %26 = arith.subf %24, %25 : vector<1x512xf32>
    %27 = vector.broadcast %23 : vector<1x512xf32> to vector<8x512xf32>
    %28 = arith.mulf %5, %27 : vector<8x512xf32>
    %29 = vector.broadcast %26 : vector<1x512xf32> to vector<8x512xf32>
    %30 = arith.addf %28, %29 : vector<8x512xf32>
    %cst_12 = arith.constant 0.000000e+00 : f32
    %31 = vector.broadcast %cst_12 : f32 to vector<8x512xf32>
    %32 = arith.maximumf %30, %31 : vector<8x512xf32>
    %c0_13 = arith.constant 0 : index
    %c0_14 = arith.constant 0 : index
    %33 = vector.load %arg1[%c0_13, %c0_14] : memref<8x512xf32, #tpu.memory_space<vmem>>, vector<8x512xf32>
    %34 = arith.addf %32, %33 : vector<8x512xf32>
    %c0_15 = arith.constant 0 : index
    %c0_16 = arith.constant 0 : index
    %35 = vector.load %arg4[%c0_15, %c0_16] : memref<512x384xf32, #tpu.memory_space<vmem>>, vector<512x384xf32>
    %cst_17 = arith.constant dense<0.000000e+00> : vector<8x384xf32>
    %36 = tpu.matmul %34, %35, %cst_17 {dimension_numbers = #tpu.dot_dimension_numbers<[1], [0], [0], [1], [0, 0, 1, 1], [], []>} : vector<8x512xf32>, vector<512x384xf32>, vector<8x384xf32> -> vector<8x384xf32>
    %c0_18 = arith.constant 0 : index
    %c0_19 = arith.constant 0 : index
    %37 = vector.load %arg5[%c0_18, %c0_19] : memref<8x384xf32, #tpu.memory_space<vmem>>, vector<1x384xf32>
    %38 = vector.broadcast %37 : vector<1x384xf32> to vector<8x384xf32>
    %39 = arith.addf %36, %38 : vector<8x384xf32>
    %cst_20 = arith.constant 0.000000e+00 : f32
    %40 = vector.broadcast %cst_20 : f32 to vector<8x384xf32>
    %41 = arith.maximumf %39, %40 : vector<8x384xf32>
    %c0_21 = arith.constant 0 : index
    %c0_22 = arith.constant 0 : index
    %42 = vector.load %arg6[%c0_21, %c0_22] : memref<384x128xf32, #tpu.memory_space<vmem>>, vector<384x128xf32>
    %cst_23 = arith.constant dense<0.000000e+00> : vector<8x128xf32>
    %43 = tpu.matmul %41, %42, %cst_23 {dimension_numbers = #tpu.dot_dimension_numbers<[1], [0], [0], [1], [0, 0, 1, 1], [], []>} : vector<8x384xf32>, vector<384x128xf32>, vector<8x128xf32> -> vector<8x128xf32>
    %c1_24 = arith.constant 1 : index
    %c0_25 = arith.constant 0 : index
    %44 = vector.load %arg5[%c1_24, %c0_25] : memref<8x384xf32, #tpu.memory_space<vmem>>, vector<1x128xf32>
    %45 = vector.broadcast %44 : vector<1x128xf32> to vector<8x128xf32>
    %46 = arith.addf %43, %45 : vector<8x128xf32>
    %c0_26 = arith.constant 0 : index
    %c0_27 = arith.constant 0 : index
    %47 = vector.load %arg7[%c0_26, %c0_27] : memref<8x128xf32, #tpu.memory_space<vmem>>, vector<8x128xf32>
    tpu.vector_store %arg7[%c0_26, %c0_27], %46 {strides = array<i32>} : memref<8x128xf32, #tpu.memory_space<vmem>>, vector<8x128xf32>,
    return
  }
}

</mosaic_0001>

<llo_original>
// kernel: tpu_custom_call.1
$region0: #{tpu_custom_call.1}
  #allocation0 [shape = 'u32[]', space=smem, size = 0x4, offset = 0x4, fixed_abs, tag = 'smem constant byte address 0x4 - core index']
  #allocation1 [shape = 'u32[144,128]{1,0:T(1,128)}', space=vmem, size = 0x12000, scoped, tag = 'internal scratch']
  %s0 = inlined_call_operand.hbm [shape: f32[8,32], index: 0, kind: input, shape index: {}]
  %s1 = inlined_call_operand.hbm [shape: f32[8,512], index: 1, kind: input, shape index: {}]
  %s2 = inlined_call_operand.hbm [shape: f32[32,512], index: 2, kind: input, shape index: {}]
  %s3 = inlined_call_operand.hbm [shape: f32[8,512], index: 3, kind: input, shape index: {}]
  %s4 = inlined_call_operand.hbm [shape: f32[512,384], index: 4, kind: input, shape index: {}]
  %s5 = inlined_call_operand.hbm [shape: f32[8,384], index: 5, kind: input, shape index: {}]
  %s6 = inlined_call_operand.hbm [shape: f32[384,128], index: 6, kind: input, shape index: {}]
  %s7 = inlined_call_operand.hbm [shape: f32[8,128], index: 7, kind: output, shape index: {}]
  %s8 = sld [smem:[#allocation0]]
  $region66: #{tpu_custom_call.1} parent=0
    _
  %s10 = ssub.s32 1, %s8
  %s11 = scalar_select 0, %s10, %s8
  $region1: #{tpu_custom_call.1} parent=0
    #allocation2 [shape = 'u8[4096]{0}', space=vmem, size = 0x1000, scoped, tag = 'input window, operand 0, single buffered']
    #allocation3 [shape = 's32[1]{0}', space=sflag, size = 0x4, scoped, tag = 'scoped memory for tpu_custom_call.1']
    #allocation4 [shape = 's32[1]{0}', space=sflag, size = 0x4, scoped, tag = 'scoped memory for tpu_custom_call.1']
    #allocation5 [shape = 'u8[16384]{0}', space=vmem, size = 0x4000, scoped, tag = 'input window, operand 1, single buffered']
    #allocation6 [shape = 's32[1]{0}', space=sflag, size = 0x4, scoped, tag = 'scoped memory for tpu_custom_call.1']
    #allocation7 [shape = 'u8[65536]{0}', space=vmem, size = 0x10000, scoped, tag = 'input window, operand 2, single buffered']
    #allocation8 [shape = 'u8[16384]{0}', space=vmem, size = 0x4000, scoped, tag = 'input window, operand 3, single buffered']
    #allocation9 [shape = 's32[1]{0}', space=sflag, size = 0x4, scoped, tag = 'scoped memory for tpu_custom_call.1']
    #allocation10 [shape = 'u8[786432]{0}', space=vmem, size = 0xc0000, scoped, tag = 'input window, operand 4, single buffered']
    #allocation11 [shape = 'u8[12288]{0}', space=vmem, size = 0x3000, scoped, tag = 'input window, operand 5, single buffered']
    #allocation12 [shape = 's32[1]{0}', space=sflag, size = 0x4, scoped, tag = 'scoped memory for tpu_custom_call.1']
    #allocation13 [shape = 'u8[196608]{0}', space=vmem, size = 0x30000, scoped, tag = 'input window, operand 6, single buffered']
    #allocation14 [shape = 'u8[4096]{0}', space=vmem, size = 0x1000, scoped, tag = 'output window, operand 0, single buffered']
    %12 = vsyncpa [#allocation3], 0
    %13 = vsyncpa [#allocation6], 0
    %14 = vsyncpa [#allocation9], 0
    %15 = vsyncpa [#allocation12], 0
    %16 = vsyncpa [#allocation4], 0
    // Predicated region
    $region2: #{tpu_custom_call.1} parent=1 // pred_check
      _
    $region3: #{tpu_custom_call.1} parent=1 // pred_check_branch
      %18 = sbr.rel (0) target = $region5
    $region4: #{tpu_custom_call.1} parent=1 // pred_region
      %s20 = ssub.s32 128, 128
      %21 = vsyncadd [#allocation3], %s20
      %s23 = sshll.u32 [#allocation2], 4
      %s24 = int_to_ptr.vmem [resolvable:$true] %s23
      %26 = dma.hbm_to_vmem [thread:$0]  %s0, 128, %s24, [#allocation3]
    $region5: #{tpu_custom_call.1} parent=1 // pred_fallthru
      _
    // Predicated region
    $region6: #{tpu_custom_call.1} parent=1 // pred_check
      _
    $region7: #{tpu_custom_call.1} parent=1 // pred_check_branch
      %28 = sbr.rel (0) target = $region9
    $region8: #{tpu_custom_call.1} parent=1 // pred_region
      %s30 = ssub.s32 512, 512
      %31 = vsyncadd [#allocation6], %s30
      %s33 = sshll.u32 [#allocation5], 4
      %s34 = int_to_ptr.vmem [resolvable:$true] %s33
      %36 = dma.hbm_to_vmem [thread:$0]  %s1, 512, %s34, [#allocation6]
    $region9: #{tpu_custom_call.1} parent=1 // pred_fallthru
      _
    // Predicated region
    $region10: #{tpu_custom_call.1} parent=1 // pred_check
      _
    $region11: #{tpu_custom_call.1} parent=1 // pred_check_branch
      %38 = sbr.rel (0) target = $region13
    $region12: #{tpu_custom_call.1} parent=1 // pred_region
      %s40 = ssub.s32 2048, 2048
      %41 = vsyncadd [#allocation6], %s40
      %s42 = sshll.u32 [#allocation7], 4
      %s43 = int_to_ptr.vmem [resolvable:$true] %s42
      %48 = dma.hbm_to_vmem [thread:$0]  %s2, 2048, %s43, [#allocation6], 512, 512, 32
    $region13: #{tpu_custom_call.1} parent=1 // pred_fallthru
      _
    // Predicated region
    $region14: #{tpu_custom_call.1} parent=1 // pred_check
      _
    $region15: #{tpu_custom_call.1} parent=1 // pred_check_branch
      %50 = sbr.rel (0) target = $region17
    $region16: #{tpu_custom_call.1} parent=1 // pred_region
      %s52 = ssub.s32 512, 512
      %53 = vsyncadd [#allocation9], %s52
      %s55 = sshll.u32 [#allocation8], 4
      %s56 = int_to_ptr.vmem [resolvable:$true] %s55
      %58 = dma.hbm_to_vmem [thread:$0]  %s3, 512, %s56, [#allocation9]
    $region17: #{tpu_custom_call.1} parent=1 // pred_fallthru
      _
    // Predicated region
    $region18: #{tpu_custom_call.1} parent=1 // pred_check
      _
    $region19: #{tpu_custom_call.1} parent=1 // pred_check_branch
      %60 = sbr.rel (0) target = $region21
    $region20: #{tpu_custom_call.1} parent=1 // pred_region
      %s62 = ssub.s32 24576, 24576
      %63 = vsyncadd [#allocation9], %s62
      %s64 = sshll.u32 [#allocation10], 4
      %s65 = int_to_ptr.vmem [resolvable:$true] %s64
      %70 = dma.hbm_to_vmem [thread:$0]  %s4, 24576, %s65, [#allocation9], 384, 384, 24
    $region21: #{tpu_custom_call.1} parent=1 // pred_fallthru
      _
    // Predicated region
    $region22: #{tpu_custom_call.1} parent=1 // pred_check
      _
    $region23: #{tpu_custom_call.1} parent=1 // pred_check_branch
      %72 = sbr.rel (0) target = $region25
    $region24: #{tpu_custom_call.1} parent=1 // pred_region
      %s74 = ssub.s32 384, 384
      %75 = vsyncadd [#allocation12], %s74
      %s77 = sshll.u32 [#allocation11], 4
      %s78 = int_to_ptr.vmem [resolvable:$true] %s77
      %80 = dma.hbm_to_vmem [thread:$0]  %s5, 384, %s78, [#allocation12]
    $region25: #{tpu_custom_call.1} parent=1 // pred_fallthru
      _
    // Predicated region
    $region26: #{tpu_custom_call.1} parent=1 // pred_check
      _
    $region27: #{tpu_custom_call.1} parent=1 // pred_check_branch
      %82 = sbr.rel (0) target = $region29
    $region28: #{tpu_custom_call.1} parent=1 // pred_region
      %s84 = ssub.s32 6144, 6144
      %85 = vsyncadd [#allocation12], %s84
      %s86 = sshll.u32 [#allocation13], 4
      %s87 = int_to_ptr.vmem [resolvable:$true] %s86
      %92 = dma.hbm_to_vmem [thread:$0]  %s6, 6144, %s87, [#allocation12], 128, 128, 8
    $region29: #{tpu_custom_call.1} parent=1 // pred_fallthru
      _
    // Predicated region
    $region30: #{tpu_custom_call.1} parent=1 // pred_check
      _
    $region31: #{tpu_custom_call.1} parent=1 // pred_check_branch
      %94 = sbr.rel (0) target = $region33
    $region32: #{tpu_custom_call.1} parent=1 // pred_region
      %95 = dma.done [#allocation3], 128
    $region33: #{tpu_custom_call.1} parent=1 // pred_fallthru
      _
    // Predicated region
    $region34: #{tpu_custom_call.1} parent=1 // pred_check
      _
    $region35: #{tpu_custom_call.1} parent=1 // pred_check_branch
      %97 = sbr.rel (0) target = $region37
    $region36: #{tpu_custom_call.1} parent=1 // pred_region
      %98 = dma.done [#allocation6], 512
    $region37: #{tpu_custom_call.1} parent=1 // pred_fallthru
      _
    // Predicated region
    $region38: #{tpu_custom_call.1} parent=1 // pred_check
      _
    $region39: #{tpu_custom_call.1} parent=1 // pred_check_branch
      %100 = sbr.rel (0) target = $region41
    $region40: #{tpu_custom_call.1} parent=1 // pred_region
      %101 = dma.done [#allocation6], 2048
    $region41: #{tpu_custom_call.1} parent=1 // pred_fallthru
      _
    // Predicated region
    $region42: #{tpu_custom_call.1} parent=1 // pred_check
      _
    $region43: #{tpu_custom_call.1} parent=1 // pred_check_branch
      %103 = sbr.rel (0) target = $region45
    $region44: #{tpu_custom_call.1} parent=1 // pred_region
      %104 = dma.done [#allocation9], 512
    $region45: #{tpu_custom_call.1} parent=1 // pred_fallthru
      _
    // Predicated region
    $region46: #{tpu_custom_call.1} parent=1 // pred_check
      _
    $region47: #{tpu_custom_call.1} parent=1 // pred_check_branch
      %106 = sbr.rel (0) target = $region49
    $region48: #{tpu_custom_call.1} parent=1 // pred_region
      %107 = dma.done [#allocation9], 24576
    $region49: #{tpu_custom_call.1} parent=1 // pred_fallthru
      _
    // Predicated region
    $region50: #{tpu_custom_call.1} parent=1 // pred_check
      _
    $region51: #{tpu_custom_call.1} parent=1 // pred_check_branch
      %109 = sbr.rel (0) target = $region53
    $region52: #{tpu_custom_call.1} parent=1 // pred_region
      %110 = dma.done [#allocation12], 384
    $region53: #{tpu_custom_call.1} parent=1 // pred_fallthru
      _
    // Predicated region
    $region54: #{tpu_custom_call.1} parent=1 // pred_check
      _
    $region55: #{tpu_custom_call.1} parent=1 // pred_check_branch
      %112 = sbr.rel (0) target = $region57
    $region56: #{tpu_custom_call.1} parent=1 // pred_region
      %113 = dma.done [#allocation12], 6144
    $region57: #{tpu_custom_call.1} parent=1 // pred_fallthru
      _
    %v114 = vld [vmem:[#allocation2] sm:$0xff]
    %v115 = vld [vmem:[#allocation7] sm:$0xff]
    %v116 = vld [vmem:[#allocation7 + $0x8] sm:$0xff]
    %v117 = vld [vmem:[#allocation7 + $0x10] sm:$0xff]
    %v118 = vld [vmem:[#allocation7 + $0x18] sm:$0xff]
    %v119 = vld [vmem:[#allocation7 + $0x20] sm:$0xff]
    %v120 = vld [vmem:[#allocation7 + $0x28] sm:$0xff]
    %v121 = vld [vmem:[#allocation7 + $0x30] sm:$0xff]
    %v122 = vld [vmem:[#allocation7 + $0x38] sm:$0xff]
    %v123 = vld [vmem:[#allocation7 + $0x40] sm:$0xff]
    %v124 = vld [vmem:[#allocation7 + $0x48] sm:$0xff]
    %v125 = vld [vmem:[#allocation7 + $0x50] sm:$0xff]
    %v126 = vld [vmem:[#allocation7 + $0x58] sm:$0xff]
    %v127 = vld [vmem:[#allocation7 + $0x60] sm:$0xff]
    %v128 = vld [vmem:[#allocation7 + $0x68] sm:$0xff]
    %v129 = vld [vmem:[#allocation7 + $0x70] sm:$0xff]
    %v130 = vld [vmem:[#allocation7 + $0x78] sm:$0xff]
    %v131 = vld [vmem:[#allocation8] ss:$8 sm:$0xf]
    %v133 = vlaneseq
    %v134 = vshrl.u32 %v133, 7
    %v135 = vsub.s32 0, %v134
    %v136 = vrot.slane %v131, %v135
    %v137 = vlaneseq
    %v138 = vshrl.u32 %v137, 7
    %v139 = vsub.s32 1, %v138
    %v140 = vrot.slane %v131, %v139
    %v141 = vlaneseq
    %v142 = vshrl.u32 %v141, 7
    %v143 = vsub.s32 2, %v142
    %v144 = vrot.slane %v131, %v143
    %v145 = vlaneseq
    %v146 = vshrl.u32 %v145, 7
    %v147 = vsub.s32 3, %v146
    %v148 = vrot.slane %v131, %v147
    %vm153 = vcmask 261120
    %v155 = vsel %vm153, %v114, 0
    %157 = vmatprep.subr.mxu0 %v116
    %158 = vmatpush1.msra.mxu0 %v115
    %159 = vmatprep.subr.mxu0 %v120
    %160 = vmatpush1.msra.mxu0 %v119
    %161 = vmatprep.subr.mxu0 %v124
    %162 = vmatpush1.msra.mxu0 %v123
    %163 = vmatprep.subr.mxu0 %v128
    %164 = vmatpush1.msra.mxu0 %v127
    %165 = vmatprep.subr.mxu0 0.0
    %166 = vmatpush1.msra.mxu0 0.0
    %167 = vmatprep.subr.mxu0 0.0
    %168 = vmatpush1.msra.mxu0 0.0
    %169 = vmatprep.subr.mxu0 0.0
    %170 = vmatpush1.msra.mxu0 0.0
    %171 = vmatprep.subr.mxu0 0.0
    %172 = vmatpush1.msra.mxu0 0.0
    %173 = vmatprep.subr.mxu0 0.0
    %174 = vmatpush1.msra.mxu0 0.0
    %175 = vmatprep.subr.mxu0 0.0
    %176 = vmatpush1.msra.mxu0 0.0
    %177 = vmatprep.subr.mxu0 0.0
    %178 = vmatpush1.msra.mxu0 0.0
    %179 = vmatprep.subr.mxu0 0.0
    %180 = vmatpush1.msra.mxu0 0.0
    %181 = vmatprep.subr.mxu0 0.0
    %182 = vmatpush1.msra.mxu0 0.0
    %183 = vmatprep.subr.mxu0 0.0
    %184 = vmatpush1.msra.mxu0 0.0
    %185 = vmatprep.subr.mxu0 0.0
    %186 = vmatpush1.msra.mxu0 0.0
    %187 = vmatprep.subr.mxu0 0.0
    %188 = vmatpush1.msra.mxu0 0.0
    %189 = vmatprep.subr.mxu0 0.0
    %190 = vmatpush1.msra.mxu0 0.0
    %191 = vmatprep.subr.mxu0 0.0
    %192 = vmatpush1.msra.mxu0 0.0
    %193 = vmatprep.subr.mxu0 0.0
    %194 = vmatpush1.msra.mxu0 0.0
    %195 = vmatprep.subr.mxu0 0.0
    %196 = vmatpush1.msra.mxu0 0.0
    %197 = vmatprep.subr.mxu0 0.0
    %198 = vmatpush1.msra.mxu0 0.0
    %199 = vmatprep.subr.mxu0 0.0
    %200 = vmatpush1.msra.mxu0 0.0
    %201 = vmatprep.subr.mxu0 0.0
    %202 = vmatpush1.msra.mxu0 0.0
    %203 = vmatprep.subr.mxu0 0.0
    %204 = vmatpush1.msra.mxu0 0.0
    %205 = vmatprep.subr.mxu0 0.0
    %206 = vmatpush1.msra.mxu0 0.0
    %207 = vmatprep.subr.mxu0 0.0
    %208 = vmatpush1.msra.mxu0 0.0
    %209 = vmatprep.subr.mxu0 0.0
    %210 = vmatpush1.msra.mxu0 0.0
    %211 = vmatprep.subr.mxu0 0.0
    %212 = vmatpush1.msra.mxu0 0.0
    %213 = vmatprep.subr.mxu0 0.0
    %214 = vmatpush1.msra.mxu0 0.0
    %215 = vmatprep.subr.mxu0 0.0
    %216 = vmatpush1.msra.mxu0 0.0
    %217 = vmatprep.subr.mxu0 0.0
    %218 = vmatpush1.msra.mxu0 0.0
    %219 = vmatprep.subr.mxu0 0.0
    %220 = vmatpush1.msra.mxu0 0.0
    %221 = vmatprep.mubr.f32.mxu0 0.0
    %222 = vmatmul.mubr.f32.gmra.mrb[0].mxu0 %v155
    %v223 = vpop.f32.mrb[0].mxu0
    %v224 = vadd.f32 %v136, %v223
    %v225 = vpop.f32.mrb[0].mxu0
    %v226 = vadd.f32 %v140, %v225
    %227 = vdwg.mxu0
    %228 = vmatprep.subr.mxu0 %v118
    %229 = vmatpush1.msra.mxu0 %v117
    %230 = vmatprep.subr.mxu0 %v122
    %231 = vmatpush1.msra.mxu0 %v121
    %232 = vmatprep.subr.mxu0 %v126
    %233 = vmatpush1.msra.mxu0 %v125
    %234 = vmatprep.subr.mxu0 %v130
    %235 = vmatpush1.msra.mxu0 %v129
    %236 = vmatprep.subr.mxu0 0.0
    %237 = vmatpush1.msra.mxu0 0.0
    %238 = vmatprep.subr.mxu0 0.0
    %239 = vmatpush1.msra.mxu0 0.0
    %240 = vmatprep.subr.mxu0 0.0
    %241 = vmatpush1.msra.mxu0 0.0
    %242 = vmatprep.subr.mxu0 0.0
    %243 = vmatpush1.msra.mxu0 0.0
    %244 = vmatprep.subr.mxu0 0.0
    %245 = vmatpush1.msra.mxu0 0.0
    %246 = vmatprep.subr.mxu0 0.0
    %247 = vmatpush1.msra.mxu0 0.0
    %248 = vmatprep.subr.mxu0 0.0
    %249 = vmatpush1.msra.mxu0 0.0
    %250 = vmatprep.subr.mxu0 0.0
    %251 = vmatpush1.msra.mxu0 0.0
    %252 = vmatprep.subr.mxu0 0.0
    %253 = vmatpush1.msra.mxu0 0.0
    %254 = vmatprep.subr.mxu0 0.0
    %255 = vmatpush1.msra.mxu0 0.0
    %256 = vmatprep.subr.mxu0 0.0
    %257 = vmatpush1.msra.mxu0 0.0
    %258 = vmatprep.subr.mxu0 0.0
    %259 = vmatpush1.msra.mxu0 0.0
    %260 = vmatprep.subr.mxu0 0.0
    %261 = vmatpush1.msra.mxu0 0.0
    %262 = vmatprep.subr.mxu0 0.0
    %263 = vmatpush1.msra.mxu0 0.0
    %264 = vmatprep.subr.mxu0 0.0
    %265 = vmatpush1.msra.mxu0 0.0
    %266 = vmatprep.subr.mxu0 0.0
    %267 = vmatpush1.msra.mxu0 0.0
    %268 = vmatprep.subr.mxu0 0.0
    %269 = vmatpush1.msra.mxu0 0.0
    %270 = vmatprep.subr.mxu0 0.0
    %271 = vmatpush1.msra.mxu0 0.0
    %272 = vmatprep.subr.mxu0 0.0
    %273 = vmatpush1.msra.mxu0 0.0
    %274 = vmatprep.subr.mxu0 0.0
    %275 = vmatpush1.msra.mxu0 0.0
    %276 = vmatprep.subr.mxu0 0.0
    %277 = vmatpush1.msra.mxu0 0.0
    %278 = vmatprep.subr.mxu0 0.0
    %279 = vmatpush1.msra.mxu0 0.0
    %280 = vmatprep.subr.mxu0 0.0
    %281 = vmatpush1.msra.mxu0 0.0
    %282 = vmatprep.subr.mxu0 0.0
    %283 = vmatpush1.msra.mxu0 0.0
    %284 = vmatprep.subr.mxu0 0.0
    %285 = vmatpush1.msra.mxu0 0.0
    %286 = vmatprep.subr.mxu0 0.0
    %287 = vmatpush1.msra.mxu0 0.0
    %288 = vmatprep.subr.mxu0 0.0
    %289 = vmatpush1.msra.mxu0 0.0
    %290 = vmatprep.subr.mxu0 0.0
    %291 = vmatpush1.msra.mxu0 0.0
    %292 = vmatprep.mubr.f32.mxu0 0.0
    %293 = vmatmul.mubr.f32.gmra.mrb[0].mxu0 %v155
    %v294 = vpop.f32.mrb[0].mxu0
    %v295 = vadd.f32 %v144, %v294
    %v296 = vpop.f32.mrb[0].mxu0
    %v297 = vadd.f32 %v148, %v296
    %298 = vdwg.mxu0
    %v299 = vrot.slane %v224, 4
    %v300 = vadd.f32 %v224, %v299
    %v301 = vrot.slane %v300, 2
    %v302 = vadd.f32 %v300, %v301
    %v303 = vrot.slane %v302, 1
    %v304 = vadd.f32 %v302, %v303
    %v305 = vrot.slane %v226, 4
    %v306 = vadd.f32 %v226, %v305
    %v307 = vrot.slane %v306, 2
    %v308 = vadd.f32 %v306, %v307
    %v309 = vrot.slane %v308, 1
    %v310 = vadd.f32 %v308, %v309
    %v311 = vrot.slane %v295, 4
    %v312 = vadd.f32 %v295, %v311
    %v313 = vrot.slane %v312, 2
    %v314 = vadd.f32 %v312, %v313
    %v315 = vrot.slane %v314, 1
    %v316 = vadd.f32 %v314, %v315
    %v317 = vrot.slane %v297, 4
    %v318 = vadd.f32 %v297, %v317
    %v319 = vrot.slane %v318, 2
    %v320 = vadd.f32 %v318, %v319
    %v321 = vrot.slane %v320, 1
    %v322 = vadd.f32 %v320, %v321
    %v323 = vrcp.pop 8.0
    %v324 = vmul.f32 %v304, %v323
    %v325 = vmul.f32 %v310, %v323
    %v326 = vmul.f32 %v316, %v323
    %v327 = vmul.f32 %v322, %v323
    %v328 = vsub.f32 %v224, %v324
    %v329 = vsub.f32 %v226, %v325
    %v330 = vsub.f32 %v295, %v326
    %v331 = vsub.f32 %v297, %v327
    %v332 = vmul.f32 %v328, %v328
    %v333 = vmul.f32 %v329, %v329
    %v334 = vmul.f32 %v330, %v330
    %v335 = vmul.f32 %v331, %v331
    %v336 = vrot.slane %v332, 4
    %v337 = vadd.f32 %v332, %v336
    %v338 = vrot.slane %v337, 2
    %v339 = vadd.f32 %v337, %v338
    %v340 = vrot.slane %v339, 1
    %v341 = vadd.f32 %v339, %v340
    %v342 = vrot.slane %v333, 4
    %v343 = vadd.f32 %v333, %v342
    %v344 = vrot.slane %v343, 2
    %v345 = vadd.f32 %v343, %v344
    %v346 = vrot.slane %v345, 1
    %v347 = vadd.f32 %v345, %v346
    %v348 = vrot.slane %v334, 4
    %v349 = vadd.f32 %v334, %v348
    %v350 = vrot.slane %v349, 2
    %v351 = vadd.f32 %v349, %v350
    %v352 = vrot.slane %v351, 1
    %v353 = vadd.f32 %v351, %v352
    %v354 = vrot.slane %v335, 4
    %v355 = vadd.f32 %v335, %v354
    %v356 = vrot.slane %v355, 2
    %v357 = vadd.f32 %v355, %v356
    %v358 = vrot.slane %v357, 1
    %v359 = vadd.f32 %v357, %v358
    %v360 = vmul.f32 %v341, %v323
    %v361 = vmul.f32 %v347, %v323
    %v362 = vmul.f32 %v353, %v323
    %v363 = vmul.f32 %v359, %v323
    %s364 = scalar_lea.vmem [#allocation8], 1
    %v365 = vld [vmem:[%s364] ss:$8 sm:$0xf]
    %v366 = vadd.f32 %v360, 1e-05
    %v367 = vadd.f32 %v361, 1e-05
    %v368 = vadd.f32 %v362, 1e-05
    %v369 = vadd.f32 %v363, 1e-05
    %v370 = vrsqrt.pop %v366
    %v371 = vrsqrt.pop %v367
    %v372 = vrsqrt.pop %v368
    %v373 = vrsqrt.pop %v369
    %v378 = vcombine.low %v370, %v371
    %v379 = vcombine.low %v372, %v373
    %v381 = vunpack.c.l.s4 1966171168
    %v382 = vunpack.c.0.s8 %v381
    %v383 = vlaneseq
    %v384 = vshrl.u32 %v383, 7
    %v385 = vsub.s32 %v382, %v384
    %v386 = vrot.slane %v378, %v385
    %v388 = vunpack.c.l.s4 1966171168
    %v389 = vunpack.c.0.s8 %v388
    %v390 = vlaneseq
    %v391 = vshrl.u32 %v390, 7
    %v392 = vsub.s32 %v389, %v391
    %v393 = vrot.slane %v379, %v392
    %v394 = vcombine.low %v386, %v393
    %v396 = vunpack.c.l.s4 1966171168
    %v397 = vunpack.c.0.s8 %v396
    %v398 = vlaneseq
    %v399 = vshrl.u32 %v398, 7
    %v400 = vsub.s32 %v397, %v399
    %v401 = vrot.slane %v394, %v400
    %v403 = vmul.f32 %v365, %v401
    %s404 = scalar_lea.vmem [#allocation8], 2
    %v405 = vld [vmem:[%s404] ss:$8 sm:$0xf]
    %v407 = vlaneseq
    %v408 = vshrl.u32 %v407, 7
    %v409 = vsub.s32 0, %v408
    %v410 = vrot.slane %v403, %v409
    %v411 = vlaneseq
    %v412 = vshrl.u32 %v411, 7
    %v413 = vsub.s32 1, %v412
    %v414 = vrot.slane %v403, %v413
    %v415 = vlaneseq
    %v416 = vshrl.u32 %v415, 7
    %v417 = vsub.s32 2, %v416
    %v418 = vrot.slane %v403, %v417
    %v419 = vlaneseq
    %v420 = vshrl.u32 %v419, 7
    %v421 = vsub.s32 3, %v420
    %v422 = vrot.slane %v403, %v421
    %v427 = vmul.f32 %v324, %v410
    %v428 = vmul.f32 %v325, %v414
    %v429 = vmul.f32 %v326, %v418
    %v430 = vmul.f32 %v327, %v422
    %v435 = vcombine.low %v427, %v428
    %v436 = vcombine.low %v429, %v430
    %v438 = vunpack.c.l.s4 1966171168
    %v439 = vunpack.c.0.s8 %v438
    %v440 = vlaneseq
    %v441 = vshrl.u32 %v440, 7
    %v442 = vsub.s32 %v439, %v441
    %v443 = vrot.slane %v435, %v442
    %v445 = vunpack.c.l.s4 1966171168
    %v446 = vunpack.c.0.s8 %v445
    %v447 = vlaneseq
    %v448 = vshrl.u32 %v447, 7
    %v449 = vsub.s32 %v446, %v448
    %v450 = vrot.slane %v436, %v449
    %v451 = vcombine.low %v443, %v450
    %v453 = vunpack.c.l.s4 1966171168
    %v454 = vunpack.c.0.s8 %v453
    %v455 = vlaneseq
    %v456 = vshrl.u32 %v455, 7
    %v457 = vsub.s32 %v454, %v456
    %v458 = vrot.slane %v451, %v457
    %v460 = vsub.f32 %v405, %v458
    %v461 = vmul.f32 %v224, %v410
    %v462 = vmul.f32 %v226, %v414
    %v463 = vmul.f32 %v295, %v418
    %v464 = vmul.f32 %v297, %v422
    %v466 = vlaneseq
    %v467 = vshrl.u32 %v466, 7
    %v468 = vsub.s32 0, %v467
    %v469 = vrot.slane %v460, %v468
    %v470 = vlaneseq
    %v471 = vshrl.u32 %v470, 7
    %v472 = vsub.s32 1, %v471
    %v473 = vrot.slane %v460, %v472
    %v474 = vlaneseq
    %v475 = vshrl.u32 %v474, 7
    %v476 = vsub.s32 2, %v475
    %v477 = vrot.slane %v460, %v476
    %v478 = vlaneseq
    %v479 = vshrl.u32 %v478, 7
    %v480 = vsub.s32 3, %v479
    %v481 = vrot.slane %v460, %v480
    %v486 = vadd.f32 %v461, %v469
    %v487 = vadd.f32 %v462, %v473
    %v488 = vadd.f32 %v463, %v477
    %v489 = vadd.f32 %v464, %v481
    %v490 = vmax.f32 %v486, 0.0
    %v491 = vmax.f32 %v487, 0.0
    %v492 = vmax.f32 %v488, 0.0
    %v493 = vmax.f32 %v489, 0.0
    %v494 = vld [vmem:[#allocation5] sm:$0xff]
    %v495 = vld [vmem:[#allocation5 + $0x8] sm:$0xff]
    %v496 = vld [vmem:[#allocation5 + $0x10] sm:$0xff]
    %v497 = vld [vmem:[#allocation5 + $0x18] sm:$0xff]
    %v498 = vadd.f32 %v490, %v494
    %v499 = vadd.f32 %v491, %v495
    %v500 = vadd.f32 %v492, %v496
    %v501 = vadd.f32 %v493, %v497
    %v502 = vld [vmem:[#allocation10] sm:$0xff]
    %v503 = vld [vmem:[#allocation10 + $0x8] sm:$0xff]
    %v504 = vld [vmem:[#allocation10 + $0x10] sm:$0xff]
    %v505 = vld [vmem:[#allocation10 + $0x18] sm:$0xff]
    %v506 = vld [vmem:[#allocation10 + $0x20] sm:$0xff]
    %v507 = vld [vmem:[#allocation10 + $0x28] sm:$0xff]
    %v508 = vld [vmem:[#allocation10 + $0x30] sm:$0xff]
    %v509 = vld [vmem:[#allocation10 + $0x38] sm:$0xff]
    %v510 = vld [vmem:[#allocation10 + $0x40] sm:$0xff]
    %v511 = vld [vmem:[#allocation10 + $0x48] sm:$0xff]
    %v512 = vld [vmem:[#allocation10 + $0x50] sm:$0xff]
    %v513 = vld [vmem:[#allocation10 + $0x58] sm:$0xff]
    %v514 = vld [vmem:[#allocation10 + $0x60] sm:$0xff]
    %v515 = vld [vmem:[#allocation10 + $0x68] sm:$0xff]
    %v516 = vld [vmem:[#allocation10 + $0x70] sm:$0xff]
    %v517 = vld [vmem:[#allocation10 + $0x78] sm:$0xff]
    %v518 = vld [vmem:[#allocation10 + $0x80] sm:$0xff]
    %v519 = vld [vmem:[#allocation10 + $0x88] sm:$0xff]
    %v520 = vld [vmem:[#allocation10 + $0x90] sm:$0xff]
    %v521 = vld [vmem:[#allocation10 + $0x98] sm:$0xff]
    %v522 = vld [vmem:[#allocation10 + $0xa0] sm:$0xff]
    %v523 = vld [vmem:[#allocation10 + $0xa8] sm:$0xff]
    %v524 = vld [vmem:[#allocation10 + $0xb0] sm:$0xff]
    %v525 = vld [vmem:[#allocation10 + $0xb8] sm:$0xff]
    %v526 = vld [vmem:[#allocation10 + $0xc0] sm:$0xff]
    %v527 = vld [vmem:[#allocation10 + $0xc8] sm:$0xff]
    %v528 = vld [vmem:[#allocation10 + $0xd0] sm:$0xff]
    %v529 = vld [vmem:[#allocation10 + $0xd8] sm:$0xff]
    %v530 = vld [vmem:[#allocation10 + $0xe0] sm:$0xff]
    %v531 = vld [vmem:[#allocation10 + $0xe8] sm:$0xff]
    %v532 = vld [vmem:[#allocation10 + $0xf0] sm:$0xff]
    %v533 = vld [vmem:[#allocation10 + $0xf8] sm:$0xff]
    %v534 = vld [vmem:[#allocation10 + $0x100] sm:$0xff]
    %v535 = vld [vmem:[#allocation10 + $0x108] sm:$0xff]
    %v536 = vld [vmem:[#allocation10 + $0x110] sm:$0xff]
    %v537 = vld [vmem:[#allocation10 + $0x118] sm:$0xff]
    %v538 = vld [vmem:[#allocation10 + $0x120] sm:$0xff]
    %v539 = vld [vmem:[#allocation10 + $0x128] sm:$0xff]
    %v540 = vld [vmem:[#allocation10 + $0x130] sm:$0xff]
    %v541 = vld [vmem:[#allocation10 + $0x138] sm:$0xff]
    %v542 = vld [vmem:[#allocation10 + $0x140] sm:$0xff]
    %v543 = vld [vmem:[#allocation10 + $0x148] sm:$0xff]
    %v544 = vld [vmem:[#allocation10 + $0x150] sm:$0xff]
    %v545 = vld [vmem:[#allocation10 + $0x158] sm:$0xff]
    %v546 = vld [vmem:[#allocation10 + $0x160] sm:$0xff]
    %v547 = vld [vmem:[#allocation10 + $0x168] sm:$0xff]
    %v548 = vld [vmem:[#allocation10 + $0x170] sm:$0xff]
    %v549 = vld [vmem:[#allocation10 + $0x178] sm:$0xff]
    %v550 = vld [vmem:[#allocation10 + $0x180] sm:$0xff]
    %v551 = vld [vmem:[#allocation10 + $0x188] sm:$0xff]
    %v552 = vld [vmem:[#allocation10 + $0x190] sm:$0xff]
    %v553 = vld [vmem:[#allocation10 + $0x198] sm:$0xff]
    %v554 = vld [vmem:[#allocation10 + $0x1a0] sm:$0xff]
    %v555 = vld [vmem:[#allocation10 + $0x1a8] sm:$0xff]
    %v556 = vld [vmem:[#allocation10 + $0x1b0] sm:$0xff]
    %v557 = vld [vmem:[#allocation10 + $0x1b8] sm:$0xff]
    %v558 = vld [vmem:[#allocation10 + $0x1c0] sm:$0xff]
    %v559 = vld [vmem:[#allocation10 + $0x1c8] sm:$0xff]
    %v560 = vld [vmem:[#allocation10 + $0x1d0] sm:$0xff]
    %v561 = vld [vmem:[#allocation10 + $0x1d8] sm:$0xff]
    %v562 = vld [vmem:[#allocation10 + $0x1e0] sm:$0xff]
    %v563 = vld [vmem:[#allocation10 + $0x1e8] sm:$0xff]
    %v564 = vld [vmem:[#allocation10 + $0x1f0] sm:$0xff]
    %v565 = vld [vmem:[#allocation10 + $0x1f8] sm:$0xff]
    %v566 = vld [vmem:[#allocation10 + $0x200] sm:$0xff]
    %v567 = vld [vmem:[#allocation10 + $0x208] sm:$0xff]
    %v568 = vld [vmem:[#allocation10 + $0x210] sm:$0xff]
    %v569 = vld [vmem:[#allocation10 + $0x218] sm:$0xff]
    %v570 = vld [vmem:[#allocation10 + $0x220] sm:$0xff]
    %v571 = vld [vmem:[#allocation10 + $0x228] sm:$0xff]
    %v572 = vld [vmem:[#allocation10 + $0x230] sm:$0xff]
    %v573 = vld [vmem:[#allocation10 + $0x238] sm:$0xff]
    %v574 = vld [vmem:[#allocation10 + $0x240] sm:$0xff]
    %v575 = vld [vmem:[#allocation10 + $0x248] sm:$0xff]
    %v576 = vld [vmem:[#allocation10 + $0x250] sm:$0xff]
    %v577 = vld [vmem:[#allocation10 + $0x258] sm:$0xff]
    %v578 = vld [vmem:[#allocation10 + $0x260] sm:$0xff]
    %v579 = vld [vmem:[#allocation10 + $0x268] sm:$0xff]
    %v580 = vld [vmem:[#allocation10 + $0x270] sm:$0xff]
    %v581 = vld [vmem:[#allocation10 + $0x278] sm:$0xff]
    %v582 = vld [vmem:[#allocation10 + $0x280] sm:$0xff]
    %v583 = vld [vmem:[#allocation10 + $0x288] sm:$0xff]
    %v584 = vld [vmem:[#allocation10 + $0x290] sm:$0xff]
    %v585 = vld [vmem:[#allocation10 + $0x298] sm:$0xff]
    %v586 = vld [vmem:[#allocation10 + $0x2a0] sm:$0xff]
    %v587 = vld [vmem:[#allocation10 + $0x2a8] sm:$0xff]
    %v588 = vld [vmem:[#allocation10 + $0x2b0] sm:$0xff]
    %v589 = vld [vmem:[#allocation10 + $0x2b8] sm:$0xff]
    %v590 = vld [vmem:[#allocation10 + $0x2c0] sm:$0xff]
    %v591 = vld [vmem:[#allocation10 + $0x2c8] sm:$0xff]
    %v592 = vld [vmem:[#allocation10 + $0x2d0] sm:$0xff]
    %v593 = vld [vmem:[#allocation10 + $0x2d8] sm:$0xff]
    %v594 = vld [vmem:[#allocation10 + $0x2e0] sm:$0xff]
    %v595 = vld [vmem:[#allocation10 + $0x2e8] sm:$0xff]
    %v596 = vld [vmem:[#allocation10 + $0x2f0] sm:$0xff]
    %v597 = vld [vmem:[#allocation10 + $0x2f8] sm:$0xff]
    %v598 = vld [vmem:[#allocation10 + $0x300] sm:$0xff]
    %v599 = vld [vmem:[#allocation10 + $0x308] sm:$0xff]
    %v600 = vld [vmem:[#allocation10 + $0x310] sm:$0xff]
    %v601 = vld [vmem:[#allocation10 + $0x318] sm:$0xff]
    %v602 = vld [vmem:[#allocation10 + $0x320] sm:$0xff]
    %v603 = vld [vmem:[#allocation10 + $0x328] sm:$0xff]
    %v604 = vld [vmem:[#allocation10 + $0x330] sm:$0xff]
    %v605 = vld [vmem:[#allocation10 + $0x338] sm:$0xff]
    %v606 = vld [vmem:[#allocation10 + $0x340] sm:$0xff]
    %v607 = vld [vmem:[#allocation10 + $0x348] sm:$0xff]
    %v608 = vld [vmem:[#allocation10 + $0x350] sm:$0xff]
    %v609 = vld [vmem:[#allocation10 + $0x358] sm:$0xff]
    %v610 = vld [vmem:[#allocation10 + $0x360] sm:$0xff]
    %v611 = vld [vmem:[#allocation10 + $0x368] sm:$0xff]
    %v612 = vld [vmem:[#allocation10 + $0x370] sm:$0xff]
    %v613 = vld [vmem:[#allocation10 + $0x378] sm:$0xff]
    %v614 = vld [vmem:[#allocation10 + $0x380] sm:$0xff]
    %v615 = vld [vmem:[#allocation10 + $0x388] sm:$0xff]
    %v616 = vld [vmem:[#allocation10 + $0x390] sm:$0xff]
    %v617 = vld [vmem:[#allocation10 + $0x398] sm:$0xff]
    %v618 = vld [vmem:[#allocation10 + $0x3a0] sm:$0xff]
    %v619 = vld [vmem:[#allocation10 + $0x3a8] sm:$0xff]
    %v620 = vld [vmem:[#allocation10 + $0x3b0] sm:$0xff]
    %v621 = vld [vmem:[#allocation10 + $0x3b8] sm:$0xff]
    %v622 = vld [vmem:[#allocation10 + $0x3c0] sm:$0xff]
    %v623 = vld [vmem:[#allocation10 + $0x3c8] sm:$0xff]
    %v624 = vld [vmem:[#allocation10 + $0x3d0] sm:$0xff]
    %v625 = vld [vmem:[#allocation10 + $0x3d8] sm:$0xff]
    %v626 = vld [vmem:[#allocation10 + $0x3e0] sm:$0xff]
    %v627 = vld [vmem:[#allocation10 + $0x3e8] sm:$0xff]
    %v628 = vld [vmem:[#allocation10 + $0x3f0] sm:$0xff]
    %v629 = vld [vmem:[#allocation10 + $0x3f8] sm:$0xff]
    %v630 = vld [vmem:[#allocation10 + $0x400] sm:$0xff]
    %v631 = vld [vmem:[#allocation10 + $0x408] sm:$0xff]
    %v632 = vld [vmem:[#allocation10 + $0x410] sm:$0xff]
    %v633 = vld [vmem:[#allocation10 + $0x418] sm:$0xff]
    %v634 = vld [vmem:[#allocation10 + $0x420] sm:$0xff]
    %v635 = vld [vmem:[#allocation10 + $0x428] sm:$0xff]
    %v636 = vld [vmem:[#allocation10 + $0x430] sm:$0xff]
    %v637 = vld [vmem:[#allocation10 + $0x438] sm:$0xff]
    %v638 = vld [vmem:[#allocation10 + $0x440] sm:$0xff]
    %v639 = vld [vmem:[#allocation10 + $0x448] sm:$0xff]
    %v640 = vld [vmem:[#allocation10 + $0x450] sm:$0xff]
    %v641 = vld [vmem:[#allocation10 + $0x458] sm:$0xff]
    %v642 = vld [vmem:[#allocation10 + $0x460] sm:$0xff]
    %v643 = vld [vmem:[#allocation10 + $0x468] sm:$0xff]
    %v644 = vld [vmem:[#allocation10 + $0x470] sm:$0xff]
    %v645 = vld [vmem:[#allocation10 + $0x478] sm:$0xff]
    %v646 = vld [vmem:[#allocation10 + $0x480] sm:$0xff]
    %v647 = vld [vmem:[#allocation10 + $0x488] sm:$0xff]
    %v648 = vld [vmem:[#allocation10 + $0x490] sm:$0xff]
    %v649 = vld [vmem:[#allocation10 + $0x498] sm:$0xff]
    %v650 = vld [vmem:[#allocation10 + $0x4a0] sm:$0xff]
    %v651 = vld [vmem:[#allocation10 + $0x4a8] sm:$0xff]
    %v652 = vld [vmem:[#allocation10 + $0x4b0] sm:$0xff]
    %v653 = vld [vmem:[#allocation10 + $0x4b8] sm:$0xff]
    %v654 = vld [vmem:[#allocation10 + $0x4c0] sm:$0xff]
    %v655 = vld [vmem:[#allocation10 + $0x4c8] sm:$0xff]
    %v656 = vld [vmem:[#allocation10 + $0x4d0] sm:$0xff]
    %v657 = vld [vmem:[#allocation10 + $0x4d8] sm:$0xff]
    %v658 = vld [vmem:[#allocation10 + $0x4e0] sm:$0xff]
    %v659 = vld [vmem:[#allocation10 + $0x4e8] sm:$0xff]
    %v660 = vld [vmem:[#allocation10 + $0x4f0] sm:$0xff]
    %v661 = vld [vmem:[#allocation10 + $0x4f8] sm:$0xff]
    %v662 = vld [vmem:[#allocation10 + $0x500] sm:$0xff]
    %v663 = vld [vmem:[#allocation10 + $0x508] sm:$0xff]
    %v664 = vld [vmem:[#allocation10 + $0x510] sm:$0xff]
    %v665 = vld [vmem:[#allocation10 + $0x518] sm:$0xff]
    %v666 = vld [vmem:[#allocation10 + $0x520] sm:$0xff]
    %v667 = vld [vmem:[#allocation10 + $0x528] sm:$0xff]
    %v668 = vld [vmem:[#allocation10 + $0x530] sm:$0xff]
    %v669 = vld [vmem:[#allocation10 + $0x538] sm:$0xff]
    %v670 = vld [vmem:[#allocation10 + $0x540] sm:$0xff]
    %v671 = vld [vmem:[#allocation10 + $0x548] sm:$0xff]
    %v672 = vld [vmem:[#allocation10 + $0x550] sm:$0xff]
    %v673 = vld [vmem:[#allocation10 + $0x558] sm:$0xff]
    %v674 = vld [vmem:[#allocation10 + $0x560] sm:$0xff]
    %v675 = vld [vmem:[#allocation10 + $0x568] sm:$0xff]
    %v676 = vld [vmem:[#allocation10 + $0x570] sm:$0xff]
    %v677 = vld [vmem:[#allocation10 + $0x578] sm:$0xff]
    %v678 = vld [vmem:[#allocation10 + $0x580] sm:$0xff]
    %v679 = vld [vmem:[#allocation10 + $0x588] sm:$0xff]
    %v680 = vld [vmem:[#allocation10 + $0x590] sm:$0xff]
    %v681 = vld [vmem:[#allocation10 + $0x598] sm:$0xff]
    %v682 = vld [vmem:[#allocation10 + $0x5a0] sm:$0xff]
    %v683 = vld [vmem:[#allocation10 + $0x5a8] sm:$0xff]
    %v684 = vld [vmem:[#allocation10 + $0x5b0] sm:$0xff]
    %v685 = vld [vmem:[#allocation10 + $0x5b8] sm:$0xff]
    %v686 = vld [vmem:[#allocation10 + $0x5c0] sm:$0xff]
    %v687 = vld [vmem:[#allocation10 + $0x5c8] sm:$0xff]
    %v688 = vld [vmem:[#allocation10 + $0x5d0] sm:$0xff]
    %v689 = vld [vmem:[#allocation10 + $0x5d8] sm:$0xff]
    %v690 = vld [vmem:[#allocation10 + $0x5e0] sm:$0xff]
    %v691 = vld [vmem:[#allocation10 + $0x5e8] sm:$0xff]
    %v692 = vld [vmem:[#allocation10 + $0x5f0] sm:$0xff]
    %v693 = vld [vmem:[#allocation10 + $0x5f8] sm:$0xff]
    %v694 = vld [vmem:[#allocation11] ss:$8 sm:$0x7]
    %v696 = vlaneseq
    %v697 = vshrl.u32 %v696, 7
    %v698 = vsub.s32 0, %v697
    %v699 = vrot.slane %v694, %v698
    %v700 = vlaneseq
    %v701 = vshrl.u32 %v700, 7
    %v702 = vsub.s32 1, %v701
    %v703 = vrot.slane %v694, %v702
    %v704 = vlaneseq
    %v705 = vshrl.u32 %v704, 7
    %v706 = vsub.s32 2, %v705
    %v707 = vrot.slane %v694, %v706
    %711 = vmatprep.subr.mxu0 %v503
    %712 = vmatpush1.msra.mxu0 %v502
    %713 = vmatprep.subr.mxu0 %v506
    %714 = vmatpush1.msra.mxu0 %v505
    %715 = vmatprep.subr.mxu0 %v509
    %716 = vmatpush1.msra.mxu0 %v508
    %717 = vmatprep.subr.mxu0 %v512
    %718 = vmatpush1.msra.mxu0 %v511
    %719 = vmatprep.subr.mxu0 %v515
    %720 = vmatpush1.msra.mxu0 %v514
    %721 = vmatprep.subr.mxu0 %v518
    %722 = vmatpush1.msra.mxu0 %v517
    %723 = vmatprep.subr.mxu0 %v521
    %724 = vmatpush1.msra.mxu0 %v520
    %725 = vmatprep.subr.mxu0 %v524
    %726 = vmatpush1.msra.mxu0 %v523
    %727 = vmatprep.subr.mxu0 %v527
    %728 = vmatpush1.msra.mxu0 %v526
    %729 = vmatprep.subr.mxu0 %v530
    %730 = vmatpush1.msra.mxu0 %v529
    %731 = vmatprep.subr.mxu0 %v533
    %732 = vmatpush1.msra.mxu0 %v532
    %733 = vmatprep.subr.mxu0 %v536
    %734 = vmatpush1.msra.mxu0 %v535
    %735 = vmatprep.subr.mxu0 %v539
    %736 = vmatpush1.msra.mxu0 %v538
    %737 = vmatprep.subr.mxu0 %v542
    %738 = vmatpush1.msra.mxu0 %v541
    %739 = vmatprep.subr.mxu0 %v545
    %740 = vmatpush1.msra.mxu0 %v544
    %741 = vmatprep.subr.mxu0 %v548
    %742 = vmatpush1.msra.mxu0 %v547
    %743 = vmatprep.subr.mxu0 %v551
    %744 = vmatpush1.msra.mxu0 %v550
    %745 = vmatprep.subr.mxu0 %v554
    %746 = vmatpush1.msra.mxu0 %v553
    %747 = vmatprep.subr.mxu0 %v557
    %748 = vmatpush1.msra.mxu0 %v556
    %749 = vmatprep.subr.mxu0 %v560
    %750 = vmatpush1.msra.mxu0 %v559
    %751 = vmatprep.subr.mxu0 %v563
    %752 = vmatpush1.msra.mxu0 %v562
    %753 = vmatprep.subr.mxu0 %v566
    %754 = vmatpush1.msra.mxu0 %v565
    %755 = vmatprep.subr.mxu0 %v569
    %756 = vmatpush1.msra.mxu0 %v568
    %757 = vmatprep.subr.mxu0 %v572
    %758 = vmatpush1.msra.mxu0 %v571
    %759 = vmatprep.subr.mxu0 %v575
    %760 = vmatpush1.msra.mxu0 %v574
    %761 = vmatprep.subr.mxu0 %v578
    %762 = vmatpush1.msra.mxu0 %v577
    %763 = vmatprep.subr.mxu0 %v581
    %764 = vmatpush1.msra.mxu0 %v580
    %765 = vmatprep.subr.mxu0 %v584
    %766 = vmatpush1.msra.mxu0 %v583
    %767 = vmatprep.subr.mxu0 %v587
    %768 = vmatpush1.msra.mxu0 %v586
    %769 = vmatprep.subr.mxu0 %v590
    %770 = vmatpush1.msra.mxu0 %v589
    %771 = vmatprep.subr.mxu0 %v593
    %772 = vmatpush1.msra.mxu0 %v592
    %773 = vmatprep.subr.mxu0 %v596
    %774 = vmatpush1.msra.mxu0 %v595
    %775 = vmatprep.mubr.f32.mxu0 %v499
    %776 = vmatmul.mubr.f32.gmra.mrb[0].mxu0 %v498
    %v777 = vpop.f32.mrb[0].mxu0
    %v778 = vadd.f32 %v699, %v777
    %v779 = vpop.f32.mrb[0].mxu0
    %v780 = vadd.f32 %v703, %v779
    %781 = vdwg.mxu0
    %782 = vmatprep.subr.mxu0 %v599
    %783 = vmatpush1.msra.mxu0 %v598
    %784 = vmatprep.subr.mxu0 %v602
    %785 = vmatpush1.msra.mxu0 %v601
    %786 = vmatprep.subr.mxu0 %v605
    %787 = vmatpush1.msra.mxu0 %v604
    %788 = vmatprep.subr.mxu0 %v608
    %789 = vmatpush1.msra.mxu0 %v607
    %790 = vmatprep.subr.mxu0 %v611
    %791 = vmatpush1.msra.mxu0 %v610
    %792 = vmatprep.subr.mxu0 %v614
    %793 = vmatpush1.msra.mxu0 %v613
    %794 = vmatprep.subr.mxu0 %v617
    %795 = vmatpush1.msra.mxu0 %v616
    %796 = vmatprep.subr.mxu0 %v620
    %797 = vmatpush1.msra.mxu0 %v619
    %798 = vmatprep.subr.mxu0 %v623
    %799 = vmatpush1.msra.mxu0 %v622
    %800 = vmatprep.subr.mxu0 %v626
    %801 = vmatpush1.msra.mxu0 %v625
    %802 = vmatprep.subr.mxu0 %v629
    %803 = vmatpush1.msra.mxu0 %v628
    %804 = vmatprep.subr.mxu0 %v632
    %805 = vmatpush1.msra.mxu0 %v631
    %806 = vmatprep.subr.mxu0 %v635
    %807 = vmatpush1.msra.mxu0 %v634
    %808 = vmatprep.subr.mxu0 %v638
    %809 = vmatpush1.msra.mxu0 %v637
    %810 = vmatprep.subr.mxu0 %v641
    %811 = vmatpush1.msra.mxu0 %v640
    %812 = vmatprep.subr.mxu0 %v644
    %813 = vmatpush1.msra.mxu0 %v643
    %814 = vmatprep.subr.mxu0 %v647
    %815 = vmatpush1.msra.mxu0 %v646
    %816 = vmatprep.subr.mxu0 %v650
    %817 = vmatpush1.msra.mxu0 %v649
    %818 = vmatprep.subr.mxu0 %v653
    %819 = vmatpush1.msra.mxu0 %v652
    %820 = vmatprep.subr.mxu0 %v656
    %821 = vmatpush1.msra.mxu0 %v655
    %822 = vmatprep.subr.mxu0 %v659
    %823 = vmatpush1.msra.mxu0 %v658
    %824 = vmatprep.subr.mxu0 %v662
    %825 = vmatpush1.msra.mxu0 %v661
    %826 = vmatprep.subr.mxu0 %v665
    %827 = vmatpush1.msra.mxu0 %v664
    %828 = vmatprep.subr.mxu0 %v668
    %829 = vmatpush1.msra.mxu0 %v667
    %830 = vmatprep.subr.mxu0 %v671
    %831 = vmatpush1.msra.mxu0 %v670
    %832 = vmatprep.subr.mxu0 %v674
    %833 = vmatpush1.msra.mxu0 %v673
    %834 = vmatprep.subr.mxu0 %v677
    %835 = vmatpush1.msra.mxu0 %v676
    %836 = vmatprep.subr.mxu0 %v680
    %837 = vmatpush1.msra.mxu0 %v679
    %838 = vmatprep.subr.mxu0 %v683
    %839 = vmatpush1.msra.mxu0 %v682
    %840 = vmatprep.subr.mxu0 %v686
    %841 = vmatpush1.msra.mxu0 %v685
    %842 = vmatprep.subr.mxu0 %v689
    %843 = vmatpush1.msra.mxu0 %v688
    %844 = vmatprep.subr.mxu0 %v692
    %845 = vmatpush1.msra.mxu0 %v691
    %846 = vmatprep.mubr.f32.mxu0 %v501
    %847 = vmatmul.mubr.f32.gmra.mrb[0].mxu0 %v500
    %v848 = vpop.f32.mrb[0].mxu0
    %v849 = vadd.f32 %v778, %v848
    %v850 = vpop.f32.mrb[0].mxu0
    %v851 = vadd.f32 %v780, %v850
    %852 = vdwg.mxu0
    %853 = vmatprep.subr.mxu0 0.0
    %854 = vmatpush1.msra.mxu0 %v504
    %855 = vmatprep.subr.mxu0 0.0
    %856 = vmatpush1.msra.mxu0 %v507
    %857 = vmatprep.subr.mxu0 0.0
    %858 = vmatpush1.msra.mxu0 %v510
    %859 = vmatprep.subr.mxu0 0.0
    %860 = vmatpush1.msra.mxu0 %v513
    %861 = vmatprep.subr.mxu0 0.0
    %862 = vmatpush1.msra.mxu0 %v516
    %863 = vmatprep.subr.mxu0 0.0
    %864 = vmatpush1.msra.mxu0 %v519
    %865 = vmatprep.subr.mxu0 0.0
    %866 = vmatpush1.msra.mxu0 %v522
    %867 = vmatprep.subr.mxu0 0.0
    %868 = vmatpush1.msra.mxu0 %v525
    %869 = vmatprep.subr.mxu0 0.0
    %870 = vmatpush1.msra.mxu0 %v528
    %871 = vmatprep.subr.mxu0 0.0
    %872 = vmatpush1.msra.mxu0 %v531
    %873 = vmatprep.subr.mxu0 0.0
    %874 = vmatpush1.msra.mxu0 %v534
    %875 = vmatprep.subr.mxu0 0.0
    %876 = vmatpush1.msra.mxu0 %v537
    %877 = vmatprep.subr.mxu0 0.0
    %878 = vmatpush1.msra.mxu0 %v540
    %879 = vmatprep.subr.mxu0 0.0
    %880 = vmatpush1.msra.mxu0 %v543
    %881 = vmatprep.subr.mxu0 0.0
    %882 = vmatpush1.msra.mxu0 %v546
    %883 = vmatprep.subr.mxu0 0.0
    %884 = vmatpush1.msra.mxu0 %v549
    %885 = vmatprep.subr.mxu0 0.0
    %886 = vmatpush1.msra.mxu0 %v552
    %887 = vmatprep.subr.mxu0 0.0
    %888 = vmatpush1.msra.mxu0 %v555
    %889 = vmatprep.subr.mxu0 0.0
    %890 = vmatpush1.msra.mxu0 %v558
    %891 = vmatprep.subr.mxu0 0.0
    %892 = vmatpush1.msra.mxu0 %v561
    %893 = vmatprep.subr.mxu0 0.0
    %894 = vmatpush1.msra.mxu0 %v564
    %895 = vmatprep.subr.mxu0 0.0
    %896 = vmatpush1.msra.mxu0 %v567
    %897 = vmatprep.subr.mxu0 0.0
    %898 = vmatpush1.msra.mxu0 %v570
    %899 = vmatprep.subr.mxu0 0.0
    %900 = vmatpush1.msra.mxu0 %v573
    %901 = vmatprep.subr.mxu0 0.0
    %902 = vmatpush1.msra.mxu0 %v576
    %903 = vmatprep.subr.mxu0 0.0
    %904 = vmatpush1.msra.mxu0 %v579
    %905 = vmatprep.subr.mxu0 0.0
    %906 = vmatpush1.msra.mxu0 %v582
    %907 = vmatprep.subr.mxu0 0.0
    %908 = vmatpush1.msra.mxu0 %v585
    %909 = vmatprep.subr.mxu0 0.0
    %910 = vmatpush1.msra.mxu0 %v588
    %911 = vmatprep.subr.mxu0 0.0
    %912 = vmatpush1.msra.mxu0 %v591
    %913 = vmatprep.subr.mxu0 0.0
    %914 = vmatpush1.msra.mxu0 %v594
    %915 = vmatprep.subr.mxu0 0.0
    %916 = vmatpush1.msra.mxu0 %v597
    %917 = vmatprep.mubr.f32.mxu0 %v499
    %918 = vmatmul.mubr.f32.gmra.mrb[0].mxu0 %v498
    %v919 = vpop.f32.mrb[0].mxu0
    %v920 = vadd.f32 %v707, %v919
    %v921 = vpop.f32.mrb[0].mxu0
    %922 = vdwg.mxu0
    %923 = vmatprep.subr.mxu0 0.0
    %924 = vmatpush1.msra.mxu0 %v600
    %925 = vmatprep.subr.mxu0 0.0
    %926 = vmatpush1.msra.mxu0 %v603
    %927 = vmatprep.subr.mxu0 0.0
    %928 = vmatpush1.msra.mxu0 %v606
    %929 = vmatprep.subr.mxu0 0.0
    %930 = vmatpush1.msra.mxu0 %v609
    %931 = vmatprep.subr.mxu0 0.0
    %932 = vmatpush1.msra.mxu0 %v612
    %933 = vmatprep.subr.mxu0 0.0
    %934 = vmatpush1.msra.mxu0 %v615
    %935 = vmatprep.subr.mxu0 0.0
    %936 = vmatpush1.msra.mxu0 %v618
    %937 = vmatprep.subr.mxu0 0.0
    %938 = vmatpush1.msra.mxu0 %v621
    %939 = vmatprep.subr.mxu0 0.0
    %940 = vmatpush1.msra.mxu0 %v624
    %941 = vmatprep.subr.mxu0 0.0
    %942 = vmatpush1.msra.mxu0 %v627
    %943 = vmatprep.subr.mxu0 0.0
    %944 = vmatpush1.msra.mxu0 %v630
    %945 = vmatprep.subr.mxu0 0.0
    %946 = vmatpush1.msra.mxu0 %v633
    %947 = vmatprep.subr.mxu0 0.0
    %948 = vmatpush1.msra.mxu0 %v636
    %949 = vmatprep.subr.mxu0 0.0
    %950 = vmatpush1.msra.mxu0 %v639
    %951 = vmatprep.subr.mxu0 0.0
    %952 = vmatpush1.msra.mxu0 %v642
    %953 = vmatprep.subr.mxu0 0.0
    %954 = vmatpush1.msra.mxu0 %v645
    %955 = vmatprep.subr.mxu0 0.0
    %956 = vmatpush1.msra.mxu0 %v648
    %957 = vmatprep.subr.mxu0 0.0
    %958 = vmatpush1.msra.mxu0 %v651
    %959 = vmatprep.subr.mxu0 0.0
    %960 = vmatpush1.msra.mxu0 %v654
    %961 = vmatprep.subr.mxu0 0.0
    %962 = vmatpush1.msra.mxu0 %v657
    %963 = vmatprep.subr.mxu0 0.0
    %964 = vmatpush1.msra.mxu0 %v660
    %965 = vmatprep.subr.mxu0 0.0
    %966 = vmatpush1.msra.mxu0 %v663
    %967 = vmatprep.subr.mxu0 0.0
    %968 = vmatpush1.msra.mxu0 %v666
    %969 = vmatprep.subr.mxu0 0.0
    %970 = vmatpush1.msra.mxu0 %v669
    %971 = vmatprep.subr.mxu0 0.0
    %972 = vmatpush1.msra.mxu0 %v672
    %973 = vmatprep.subr.mxu0 0.0
    %974 = vmatpush1.msra.mxu0 %v675
    %975 = vmatprep.subr.mxu0 0.0
    %976 = vmatpush1.msra.mxu0 %v678
    %977 = vmatprep.subr.mxu0 0.0
    %978 = vmatpush1.msra.mxu0 %v681
    %979 = vmatprep.subr.mxu0 0.0
    %980 = vmatpush1.msra.mxu0 %v684
    %981 = vmatprep.subr.mxu0 0.0
    %982 = vmatpush1.msra.mxu0 %v687
    %983 = vmatprep.subr.mxu0 0.0
    %984 = vmatpush1.msra.mxu0 %v690
    %985 = vmatprep.subr.mxu0 0.0
    %986 = vmatpush1.msra.mxu0 %v693
    %987 = vmatprep.mubr.f32.mxu0 %v501
    %988 = vmatmul.mubr.f32.gmra.mrb[0].mxu0 %v500
    %v989 = vpop.f32.mrb[0].mxu0
    %v990 = vadd.f32 %v920, %v989
    %v991 = vpop.f32.mrb[0].mxu0
    %992 = vdwg.mxu0
    %v993 = vmax.f32 %v849, 0.0
    %v994 = vmax.f32 %v851, 0.0
    %v995 = vmax.f32 %v990, 0.0
    %v996 = vld [vmem:[#allocation13] sm:$0xff]
    %v997 = vld [vmem:[#allocation13 + $0x8] sm:$0xff]
    %v998 = vld [vmem:[#allocation13 + $0x10] sm:$0xff]
    %v999 = vld [vmem:[#allocation13 + $0x18] sm:$0xff]
    %v1000 = vld [vmem:[#allocation13 + $0x20] sm:$0xff]
    %v1001 = vld [vmem:[#allocation13 + $0x28] sm:$0xff]
    %v1002 = vld [vmem:[#allocation13 + $0x30] sm:$0xff]
    %v1003 = vld [vmem:[#allocation13 + $0x38] sm:$0xff]
    %v1004 = vld [vmem:[#allocation13 + $0x40] sm:$0xff]
    %v1005 = vld [vmem:[#allocation13 + $0x48] sm:$0xff]
    %v1006 = vld [vmem:[#allocation13 + $0x50] sm:$0xff]
    %v1007 = vld [vmem:[#allocation13 + $0x58] sm:$0xff]
    %v1008 = vld [vmem:[#allocation13 + $0x60] sm:$0xff]
    %v1009 = vld [vmem:[#allocation13 + $0x68] sm:$0xff]
    %v1010 = vld [vmem:[#allocation13 + $0x70] sm:$0xff]
    %v1011 = vld [vmem:[#allocation13 + $0x78] sm:$0xff]
    %v1012 = vld [vmem:[#allocation13 + $0x80] sm:$0xff]
    %v1013 = vld [vmem:[#allocation13 + $0x88] sm:$0xff]
    %v1014 = vld [vmem:[#allocation13 + $0x90] sm:$0xff]
    %v1015 = vld [vmem:[#allocation13 + $0x98] sm:$0xff]
    %v1016 = vld [vmem:[#allocation13 + $0xa0] sm:$0xff]
    %v1017 = vld [vmem:[#allocation13 + $0xa8] sm:$0xff]
    %v1018 = vld [vmem:[#allocation13 + $0xb0] sm:$0xff]
    %v1019 = vld [vmem:[#allocation13 + $0xb8] sm:$0xff]
    %v1020 = vld [vmem:[#allocation13 + $0xc0] sm:$0xff]
    %v1021 = vld [vmem:[#allocation13 + $0xc8] sm:$0xff]
    %v1022 = vld [vmem:[#allocation13 + $0xd0] sm:$0xff]
    %v1023 = vld [vmem:[#allocation13 + $0xd8] sm:$0xff]
    %v1024 = vld [vmem:[#allocation13 + $0xe0] sm:$0xff]
    %v1025 = vld [vmem:[#allocation13 + $0xe8] sm:$0xff]
    %v1026 = vld [vmem:[#allocation13 + $0xf0] sm:$0xff]
    %v1027 = vld [vmem:[#allocation13 + $0xf8] sm:$0xff]
    %v1028 = vld [vmem:[#allocation13 + $0x100] sm:$0xff]
    %v1029 = vld [vmem:[#allocation13 + $0x108] sm:$0xff]
    %v1030 = vld [vmem:[#allocation13 + $0x110] sm:$0xff]
    %v1031 = vld [vmem:[#allocation13 + $0x118] sm:$0xff]
    %v1032 = vld [vmem:[#allocation13 + $0x120] sm:$0xff]
    %v1033 = vld [vmem:[#allocation13 + $0x128] sm:$0xff]
    %v1034 = vld [vmem:[#allocation13 + $0x130] sm:$0xff]
    %v1035 = vld [vmem:[#allocation13 + $0x138] sm:$0xff]
    %v1036 = vld [vmem:[#allocation13 + $0x140] sm:$0xff]
    %v1037 = vld [vmem:[#allocation13 + $0x148] sm:$0xff]
    %v1038 = vld [vmem:[#allocation13 + $0x150] sm:$0xff]
    %v1039 = vld [vmem:[#allocation13 + $0x158] sm:$0xff]
    %v1040 = vld [vmem:[#allocation13 + $0x160] sm:$0xff]
    %v1041 = vld [vmem:[#allocation13 + $0x168] sm:$0xff]
    %v1042 = vld [vmem:[#allocation13 + $0x170] sm:$0xff]
    %v1043 = vld [vmem:[#allocation13 + $0x178] sm:$0xff]
    %v1044 = vld [vmem:[#allocation11 + $0x1] ss:$0 sm:$0xff]
    %1045 = vmatprep.subr.mxu0 0.0
    %1046 = vmatpush1.msra.mxu0 %v996
    %1047 = vmatprep.subr.mxu0 0.0
    %1048 = vmatpush1.msra.mxu0 %v997
    %1049 = vmatprep.subr.mxu0 0.0
    %1050 = vmatpush1.msra.mxu0 %v998
    %1051 = vmatprep.subr.mxu0 0.0
    %1052 = vmatpush1.msra.mxu0 %v999
    %1053 = vmatprep.subr.mxu0 0.0
    %1054 = vmatpush1.msra.mxu0 %v1000
    %1055 = vmatprep.subr.mxu0 0.0
    %1056 = vmatpush1.msra.mxu0 %v1001
    %1057 = vmatprep.subr.mxu0 0.0
    %1058 = vmatpush1.msra.mxu0 %v1002
    %1059 = vmatprep.subr.mxu0 0.0
    %1060 = vmatpush1.msra.mxu0 %v1003
    %1061 = vmatprep.subr.mxu0 0.0
    %1062 = vmatpush1.msra.mxu0 %v1004
    %1063 = vmatprep.subr.mxu0 0.0
    %1064 = vmatpush1.msra.mxu0 %v1005
    %1065 = vmatprep.subr.mxu0 0.0
    %1066 = vmatpush1.msra.mxu0 %v1006
    %1067 = vmatprep.subr.mxu0 0.0
    %1068 = vmatpush1.msra.mxu0 %v1007
    %1069 = vmatprep.subr.mxu0 0.0
    %1070 = vmatpush1.msra.mxu0 %v1008
    %1071 = vmatprep.subr.mxu0 0.0
    %1072 = vmatpush1.msra.mxu0 %v1009
    %1073 = vmatprep.subr.mxu0 0.0
    %1074 = vmatpush1.msra.mxu0 %v1010
    %1075 = vmatprep.subr.mxu0 0.0
    %1076 = vmatpush1.msra.mxu0 %v1011
    %1077 = vmatprep.subr.mxu0 0.0
    %1078 = vmatpush1.msra.mxu0 %v1012
    %1079 = vmatprep.subr.mxu0 0.0
    %1080 = vmatpush1.msra.mxu0 %v1013
    %1081 = vmatprep.subr.mxu0 0.0
    %1082 = vmatpush1.msra.mxu0 %v1014
    %1083 = vmatprep.subr.mxu0 0.0
    %1084 = vmatpush1.msra.mxu0 %v1015
    %1085 = vmatprep.subr.mxu0 0.0
    %1086 = vmatpush1.msra.mxu0 %v1016
    %1087 = vmatprep.subr.mxu0 0.0
    %1088 = vmatpush1.msra.mxu0 %v1017
    %1089 = vmatprep.subr.mxu0 0.0
    %1090 = vmatpush1.msra.mxu0 %v1018
    %1091 = vmatprep.subr.mxu0 0.0
    %1092 = vmatpush1.msra.mxu0 %v1019
    %1093 = vmatprep.subr.mxu0 0.0
    %1094 = vmatpush1.msra.mxu0 %v1020
    %1095 = vmatprep.subr.mxu0 0.0
    %1096 = vmatpush1.msra.mxu0 %v1021
    %1097 = vmatprep.subr.mxu0 0.0
    %1098 = vmatpush1.msra.mxu0 %v1022
    %1099 = vmatprep.subr.mxu0 0.0
    %1100 = vmatpush1.msra.mxu0 %v1023
    %1101 = vmatprep.subr.mxu0 0.0
    %1102 = vmatpush1.msra.mxu0 %v1024
    %1103 = vmatprep.subr.mxu0 0.0
    %1104 = vmatpush1.msra.mxu0 %v1025
    %1105 = vmatprep.subr.mxu0 0.0
    %1106 = vmatpush1.msra.mxu0 %v1026
    %1107 = vmatprep.subr.mxu0 0.0
    %1108 = vmatpush1.msra.mxu0 %v1027
    %1109 = vmatprep.mubr.f32.mxu0 %v994
    %1110 = vmatmul.mubr.f32.gmra.mrb[0].mxu0 %v993
    %v1111 = vpop.f32.mrb[0].mxu0
    %v1112 = vadd.f32 %v1044, %v1111
    %v1113 = vpop.f32.mrb[0].mxu0
    %1114 = vdwg.mxu0
    %1115 = vmatprep.subr.mxu0 0.0
    %1116 = vmatpush1.msra.mxu0 %v1028
    %1117 = vmatprep.subr.mxu0 0.0
    %1118 = vmatpush1.msra.mxu0 %v1029
    %1119 = vmatprep.subr.mxu0 0.0
    %1120 = vmatpush1.msra.mxu0 %v1030
    %1121 = vmatprep.subr.mxu0 0.0
    %1122 = vmatpush1.msra.mxu0 %v1031
    %1123 = vmatprep.subr.mxu0 0.0
    %1124 = vmatpush1.msra.mxu0 %v1032
    %1125 = vmatprep.subr.mxu0 0.0
    %1126 = vmatpush1.msra.mxu0 %v1033
    %1127 = vmatprep.subr.mxu0 0.0
    %1128 = vmatpush1.msra.mxu0 %v1034
    %1129 = vmatprep.subr.mxu0 0.0
    %1130 = vmatpush1.msra.mxu0 %v1035
    %1131 = vmatprep.subr.mxu0 0.0
    %1132 = vmatpush1.msra.mxu0 %v1036
    %1133 = vmatprep.subr.mxu0 0.0
    %1134 = vmatpush1.msra.mxu0 %v1037
    %1135 = vmatprep.subr.mxu0 0.0
    %1136 = vmatpush1.msra.mxu0 %v1038
    %1137 = vmatprep.subr.mxu0 0.0
    %1138 = vmatpush1.msra.mxu0 %v1039
    %1139 = vmatprep.subr.mxu0 0.0
    %1140 = vmatpush1.msra.mxu0 %v1040
    %1141 = vmatprep.subr.mxu0 0.0
    %1142 = vmatpush1.msra.mxu0 %v1041
    %1143 = vmatprep.subr.mxu0 0.0
    %1144 = vmatpush1.msra.mxu0 %v1042
    %1145 = vmatprep.subr.mxu0 0.0
    %1146 = vmatpush1.msra.mxu0 %v1043
    %1147 = vmatprep.subr.mxu0 0.0
    %1148 = vmatpush1.msra.mxu0 0.0
    %1149 = vmatprep.subr.mxu0 0.0
    %1150 = vmatpush1.msra.mxu0 0.0
    %1151 = vmatprep.subr.mxu0 0.0
    %1152 = vmatpush1.msra.mxu0 0.0
    %1153 = vmatprep.subr.mxu0 0.0
    %1154 = vmatpush1.msra.mxu0 0.0
    %1155 = vmatprep.subr.mxu0 0.0
    %1156 = vmatpush1.msra.mxu0 0.0
    %1157 = vmatprep.subr.mxu0 0.0
    %1158 = vmatpush1.msra.mxu0 0.0
    %1159 = vmatprep.subr.mxu0 0.0
    %1160 = vmatpush1.msra.mxu0 0.0
    %1161 = vmatprep.subr.mxu0 0.0
    %1162 = vmatpush1.msra.mxu0 0.0
    %1163 = vmatprep.subr.mxu0 0.0
    %1164 = vmatpush1.msra.mxu0 0.0
    %1165 = vmatprep.subr.mxu0 0.0
    %1166 = vmatpush1.msra.mxu0 0.0
    %1167 = vmatprep.subr.mxu0 0.0
    %1168 = vmatpush1.msra.mxu0 0.0
    %1169 = vmatprep.subr.mxu0 0.0
    %1170 = vmatpush1.msra.mxu0 0.0
    %1171 = vmatprep.subr.mxu0 0.0
    %1172 = vmatpush1.msra.mxu0 0.0
    %1173 = vmatprep.subr.mxu0 0.0
    %1174 = vmatpush1.msra.mxu0 0.0
    %1175 = vmatprep.subr.mxu0 0.0
    %1176 = vmatpush1.msra.mxu0 0.0
    %1177 = vmatprep.subr.mxu0 0.0
    %1178 = vmatpush1.msra.mxu0 0.0
    %1179 = vmatprep.mubr.f32.mxu0 0.0
    %1180 = vmatmul.mubr.f32.gmra.mrb[0].mxu0 %v995
    %v1181 = vpop.f32.mrb[0].mxu0
    %v1182 = vadd.f32 %v1112, %v1181
    %v1183 = vpop.f32.mrb[0].mxu0
    %1184 = vdwg.mxu0
    %1185 = vst [vmem:[#allocation14] sm:$0xff] %v1182
    // Predicated region
    $region58: #{tpu_custom_call.1} parent=1 // pred_check
      _
    $region59: #{tpu_custom_call.1} parent=1 // pred_check_branch
      %1187 = sbr.rel (0) target = $region61
    $region60: #{tpu_custom_call.1} parent=1 // pred_region
      %s1189 = ssub.s32 128, 128
      %1190 = vsyncadd [#allocation4], %s1189
      %s1192 = sshll.u32 [#allocation14], 4
      %s1193 = int_to_ptr.vmem [resolvable:$true] %s1192
      %1195 = dma.vmem_to_hbm [thread:$0]  %s1193, 128, %s7, [#allocation4]
    $region61: #{tpu_custom_call.1} parent=1 // pred_fallthru
      _
    // Predicated region
    $region62: #{tpu_custom_call.1} parent=1 // pred_check
      _
    $region63: #{tpu_custom_call.1} parent=1 // pred_check_branch
      %1197 = sbr.rel (0) target = $region65
    $region64: #{tpu_custom_call.1} parent=1 // pred_region
      %1198 = dma.done [#allocation4], 128
    $region65: #{tpu_custom_call.1} parent=1 // pred_fallthru
      _
    %1199 = vsyncpa [#allocation3], 1
    %1200 = vsyncpa [#allocation6], 1
    %1201 = vsyncpa [#allocation9], 1
    %1202 = vsyncpa [#allocation12], 1
    %1203 = vsyncpa [#allocation4], 1

</llo_original>
